<compile_context>
chip_gen: v6e
topology: v6e:2x2x1
jax: 0.10.0
libtpu: 0.0.40
codegen_flags: <defaults>
</compile_context>

<pallas_src>
import math

import jax
import jax.numpy as jnp
from jax.experimental import pallas as pl
from jax.experimental.pallas import tpu as pltpu

# Candidate lane-dense column counts (multiples of 128, widest first) for the
# 2D flattening of the copy; wider => longer contiguous DMA bursts.
_LANE_WIDTHS = (4096, 2048, 1024, 512, 256, 128)
_MAX_DMA_CHUNKS = 4          # concurrent DMAs (one semaphore each)
_CHUNK_MIN_BYTES = 1 << 20   # only split the copy when the tensor >= 1 MiB


def _make_dma_copy_kernel(rows: int, n_chunks: int, chunk_rows: int):
    """Build an HBM->HBM DMA copy kernel over a (rows, cols) slab.

    No VMEM staging: both refs stay in HBM (memory_space=pl.ANY) and the copy
    is issued as `n_chunks` concurrent DMAs over disjoint, contiguous row
    ranges, then all are waited on before the kernel returns.
    """

    def kernel(x_hbm, o_hbm, sems):
        copies = []
        for c in range(n_chunks):          # static Python loop (shapes static)
            r0 = c * chunk_rows
            r = min(chunk_rows, rows - r0)  # ragged last chunk handled statically
            cp = pltpu.make_async_copy(
                x_hbm.at[pl.ds(r0, r), :],
                o_hbm.at[pl.ds(r0, r), :],
                sems.at[c],
            )
            cp.start()
            copies.append(cp)
        for cp in copies:
            cp.wait()

    return kernel


def squeeze(x: jax.Array) -> jax.Array:
    """Pallas equivalent of torch.squeeze(x): removes every dim of size 1."""
    out_shape = tuple(d for d in x.shape if d != 1)

    if out_shape == x.shape:
        # Nothing to squeeze; torch.squeeze returns the tensor unchanged.
        return x

    total = math.prod(x.shape) if x.ndim else 1
    itemsize = jnp.dtype(x.dtype).itemsize

    if len(out_shape) == 0 or total == 0:
        # All dims size 1 (0-d result, matching torch exactly) or empty
        # tensor: pure metadata reshape, no kernel needed.
        return jnp.reshape(x, out_shape)

    # Lane-dense 2D factorization: pick the widest multiple-of-128 divisor.
    cols = next((c for c in _LANE_WIDTHS if total % c == 0), None)
    if cols is None:
        # Element count not a multiple of 128.  torch.squeeze is metadata-only
        # anyway, so a free reshape is always correct and never risks VMEM.
        # TODO(synk): could split into a 128-aligned DMA body + tiny tail if a
        # kernel were strictly required for these shapes.
        return jnp.reshape(x, out_shape)

    rows = total // cols

    # Split the copy over up to 4 concurrent DMAs once the tensor is >= 1 MiB
    # so multiple DMA engines overlap; a single DMA otherwise.
    if rows >= 2 and total * itemsize >= _CHUNK_MIN_BYTES:
        n_chunks = min(_MAX_DMA_CHUNKS, rows)
    else:
        n_chunks = 1
    chunk_rows = pl.cdiv(rows, n_chunks)
    n_chunks = pl.cdiv(rows, chunk_rows)

    x2 = jnp.reshape(x, (rows, cols))  # metadata-only on a contiguous array
    y2 = pl.pallas_call(
        _make_dma_copy_kernel(rows, n_chunks, chunk_rows),
        out_shape=jax.ShapeDtypeStruct((rows, cols), x.dtype),
        in_specs=[pl.BlockSpec(memory_space=pl.ANY)],   # raw HBM ref in
        out_specs=pl.BlockSpec(memory_space=pl.ANY),    # raw HBM ref out
        scratch_shapes=[pltpu.SemaphoreType.DMA((n_chunks,))],
        cost_estimate=pl.CostEstimate(
            flops=0,
            transcendentals=0,
            bytes_accessed=2 * total * itemsize),
    )(x2)
    return jnp.reshape(y2, out_shape)


if __name__ == "__main__":
    key = jax.random.PRNGKey(0)
    k1, k2, k3, k4 = jax.random.split(key, 4)

    tests = [
        # NCHW-ish demo input with a size-1 channel dim (total = 512 elems).
        jax.random.normal(k1, (2, 1, 16, 16), dtype=jnp.float32),
        # bf16 with multiple size-1 dims.
        jax.random.normal(k2, (1, 4, 1, 8, 32), dtype=jnp.bfloat16),
        # Odd element count (15) -> pure metadata reshape fallback.
        jax.random.normal(k3, (3, 1, 5), dtype=jnp.float32),
        # All-size-1 shape -> 0-d result, matching torch.squeeze.
        jnp.ones((1, 1, 1), dtype=jnp.float32),
        # 1 MiB tensor -> exercises the 4-way chunked concurrent DMA path.
        jax.random.normal(k4, (4, 1, 256, 256), dtype=jnp.float32),
    ]

    for x in tests:
        y = jax.block_until_ready(squeeze(x))
        ref = jnp.squeeze(x)
        assert y.shape == ref.shape, (x.shape, y.shape, ref.shape)
        assert y.dtype == ref.dtype, (y.dtype, ref.dtype)
        assert bool(jnp.array_equal(y, ref)), f"value mismatch for {x.shape}"

    print("KERNEL_OK")
</pallas_src>

<mosaic_0001>
module attributes {stable_mosaic.version = 11 : i64} {
  func.func @kernel(%arg0: memref<1x512xf32, #tpu.memory_space<any>>, %arg1: memref<1x512xf32, #tpu.memory_space<any>>, %arg2: memref<1x!tpu.dma_semaphore, #tpu.memory_space<semaphore_mem>>) attributes {dimension_semantics = [], scalar_prefetch = 0 : i64, scratch_operands = 1 : i64, tpu.core_type = #tpu.core_type<tc>} {
    %c0_i32 = arith.constant 0 : i32
    %c0_i32_0 = arith.constant 0 : i32
    %c0_i32_1 = arith.constant 0 : i32
    %0 = tpu.memref_slice %arg0[%c0_i32_0, %c0_i32_1] : memref<1x512xf32, #tpu.memory_space<any>> -> memref<1x512xf32, #tpu.memory_space<any>>
    %c0_i32_2 = arith.constant 0 : i32
    %c0_i32_3 = arith.constant 0 : i32
    %1 = tpu.memref_slice %arg1[%c0_i32_2, %c0_i32_3] : memref<1x512xf32, #tpu.memory_space<any>> -> memref<1x512xf32, #tpu.memory_space<any>>
    %2 = tpu.memref_slice %arg2[%c0_i32] : memref<1x!tpu.dma_semaphore, #tpu.memory_space<semaphore_mem>> -> memref<1x!tpu.dma_semaphore, #tpu.memory_space<semaphore_mem>>
    %3 = tpu.memref_squeeze %2 : memref<1x!tpu.dma_semaphore, #tpu.memory_space<semaphore_mem>> -> memref<!tpu.dma_semaphore, #tpu.memory_space<semaphore_mem>>
    tpu.enqueue_dma source(%0 : memref<1x512xf32, #tpu.memory_space<any>>) target(%1 : memref<1x512xf32, #tpu.memory_space<any>>) target_semaphore(%3 : memref<!tpu.dma_semaphore, #tpu.memory_space<semaphore_mem>>)
    %c0_i32_4 = arith.constant 0 : i32
    %c0_i32_5 = arith.constant 0 : i32
    %c0_i32_6 = arith.constant 0 : i32
    %4 = tpu.memref_slice %arg0[%c0_i32_5, %c0_i32_6] : memref<1x512xf32, #tpu.memory_space<any>> -> memref<1x512xf32, #tpu.memory_space<any>>
    %c0_i32_7 = arith.constant 0 : i32
    %c0_i32_8 = arith.constant 0 : i32
    %5 = tpu.memref_slice %arg1[%c0_i32_7, %c0_i32_8] : memref<1x512xf32, #tpu.memory_space<any>> -> memref<1x512xf32, #tpu.memory_space<any>>
    %6 = tpu.memref_slice %arg2[%c0_i32_4] : memref<1x!tpu.dma_semaphore, #tpu.memory_space<semaphore_mem>> -> memref<1x!tpu.dma_semaphore, #tpu.memory_space<semaphore_mem>>
    %7 = tpu.memref_squeeze %6 : memref<1x!tpu.dma_semaphore, #tpu.memory_space<semaphore_mem>> -> memref<!tpu.dma_semaphore, #tpu.memory_space<semaphore_mem>>
    tpu.wait_dma2 semaphore(%7 : memref<!tpu.dma_semaphore, #tpu.memory_space<semaphore_mem>>) src(%4 : memref<1x512xf32, #tpu.memory_space<any>>) dst(%5 : memref<1x512xf32, #tpu.memory_space<any>>)
    return
  }
}

</mosaic_0001>

<llo_original>
// kernel: tpu_custom_call.1
$region0: #{tpu_custom_call.1}
  #allocation0 [shape = 'u32[]', space=smem, size = 0x4, offset = 0x4, fixed_abs, tag = 'smem constant byte address 0x4 - core index']
  #allocation1 [shape = 'u32[144,128]{1,0:T(1,128)}', space=vmem, size = 0x12000, scoped, tag = 'internal scratch']
  #allocation2 [shape = 's32[1]{0}', space=sflag, size = 0x4, scoped, tag = 'scratch operand']
  #allocation3 [shape = 's32[]', space=sflag, size = 0x4, offset = 0, fixed_abs, tag = 'sflag constant byte address 0x0 - dummy sync flag']
  #allocation4 [shape = 'u32[0]{0}', space=smem, size = 0, offset = 0, fixed_abs, tag = 'smem constant byte address 0x0 - null']
  %s0 = inlined_call_operand.hbm [shape: f32[1,512], index: 0, kind: input, shape index: {}]
  %s1 = inlined_call_operand.hbm [shape: f32[1,512], index: 1, kind: output, shape index: {}]
  %s2 = sld [smem:[#allocation0]]
  $region2: #{tpu_custom_call.1} parent=0
    _
  %s4 = ssub.s32 1, %s2
  %s5 = scalar_select 0, %s4, %s2
  %s7 = sshll.u32 1, 14
  %s8 = sxor.u32 4294967295, %s7
  %12 = dma.general %s0, 64, %s1, [#allocation2], 131072, [#allocation4], 0, 0
  %s13 = smul.u32 1, 4
  %s14 = sshll.u32 %s13, 4
  %15 = dma.done [#allocation2], %s14
  %16 = vsyncmov [#allocation2]
  %s17 = vpop.sfrf %16
  %p18 = scmp.eq.s32.totalorder %s17, 0
  %p19 = pneg %p18
  %21 = shalt.err (%p19)

</llo_original>
